<compile_context>
chip_gen: v7x
topology: tpu7x:2x2x1
jax: 0.10.0
libtpu: 0.0.40
codegen_flags: <defaults>
</compile_context>

<pallas_src>
import functools

import jax
import jax.numpy as jnp
from jax.experimental import pallas as pl
from jax.experimental.pallas import tpu as pltpu

EPS = 1e-5


# ----------------------------------------------------------------------------
# Pallas kernel: fused matmul (bf16 in, f32 acc) + per-channel bias + act
# ----------------------------------------------------------------------------
def _fused_matmul_kernel(a_ref, b_ref, c_ref, o_ref, *, act):
    acc = jnp.dot(a_ref[...], b_ref[...], preferred_element_type=jnp.float32)
    y = acc + c_ref[...]
    if act == "leaky":
        y = jnp.where(y >= 0.0, y, 0.2 * y)
    elif act == "relu":
        y = jnp.maximum(y, 0.0)
    elif act == "tanh":
        y = jnp.tanh(y)
    # act == "none": pass-through
    o_ref[...] = y.astype(o_ref.dtype)


def fused_matmul(a, b, bias, act, out_dtype=jnp.bfloat16):
    """a: (M, K) patches, b: (K, N) weights -> act(a@b + bias) in out_dtype."""
    M, K = a.shape
    K2, N = b.shape
    assert K == K2
    a = a.astype(jnp.bfloat16)
    b = b.astype(jnp.bfloat16)
    c = bias.reshape(1, N).astype(jnp.float32)

    # Adaptive row tile: keep the double-buffered bf16 A stream ~<= 8 MiB,
    # capped at 1024 rows (safe against v7x's 64 MiB physical VMEM).
    tm = min(1024, max(256, (((4 << 20) // (2 * K)) // 256) * 256))
    if M <= tm:
        tm = M                       # single step, any M allowed (full dim)
        m_pad = M
    else:
        m_pad = ((M + tm - 1) // tm) * tm
        if m_pad != M:               # only 3 of 16 layers hit this path
            a = jnp.pad(a, ((0, m_pad - M), (0, 0)))

    out = pl.pallas_call(
        functools.partial(_fused_matmul_kernel, act=act),
        out_shape=jax.ShapeDtypeStruct((m_pad, N), out_dtype),
        grid_spec=pltpu.PrefetchScalarGridSpec(
            num_scalar_prefetch=0,
            grid=(m_pad // tm,),
            in_specs=[
                pl.BlockSpec((tm, K), lambda i: (i, 0)),   # streaming A tile
                pl.BlockSpec((K, N), lambda i: (0, 0)),    # resident weights
                pl.BlockSpec((1, N), lambda i: (0, 0)),    # resident bias
            ],
            out_specs=pl.BlockSpec((tm, N), lambda i: (i, 0)),
        ),
        compiler_params=pltpu.CompilerParams(
            dimension_semantics=("parallel",),
            vmem_limit_bytes=32 * 1024 * 1024,
        ),
    )(a, b, c)
    return out[:M] if m_pad != M else out


# ----------------------------------------------------------------------------
# Patch-extraction glue (plain JAX: slicing / stacking only)
# ----------------------------------------------------------------------------
def im2col(xp, k, stride):
    """xp: padded NHWC input -> (N*oh*ow, k*k*C) patch matrix."""
    N, H, W, C = xp.shape
    oh = (H - k) // stride + 1
    ow = (W - k) // stride + 1
    cols = []
    for i in range(k):
        for j in range(k):
            cols.append(xp[:, i:i + stride * oh:stride,
                           j:j + stride * ow:stride, :])
    patches = jnp.stack(cols, axis=-2)          # (N, oh, ow, k*k, C)
    return patches.reshape(N * oh * ow, k * k * C), oh, ow


def conv_down(x, w_mat, bias, act, out_dtype=jnp.bfloat16):
    """Conv2d(k=4, s=2, p=1, padding_mode='reflect') + bias + act."""
    N, H, W, C = x.shape
    xp = jnp.pad(x, ((0, 0), (1, 1), (1, 1), (0, 0)), mode="reflect")
    cols, oh, ow = im2col(xp, 4, 2)
    out = fused_matmul(cols, w_mat, bias, act, out_dtype)
    return out.reshape(N, oh, ow, -1)


def conv_up(x, w_mat, bias, act, out_dtype=jnp.bfloat16):
    """ConvTranspose2d(k=4, s=2, p=1) + bias + act, sub-pixel decomposition.

    One stride-1 correlation with 2x2 windows over the zero-padded input
    produces all 4 output phases (columns ordered (dy, dx, cout)); the
    pixel-shuffle interleave is plain-JAX data movement.
    """
    N, H, W, C = x.shape
    cout = w_mat.shape[1] // 4
    xp = jnp.pad(x, ((0, 0), (1, 1), (1, 1), (0, 0)))
    cols, oh, ow = im2col(xp, 2, 1)              # oh = H+1, ow = W+1, K = 4*C
    bias4 = jnp.tile(bias, 4)
    out = fused_matmul(cols, w_mat, bias4, act, out_dtype)
    r = out.reshape(N, H + 1, W + 1, 2, 2, cout)
    top = jnp.stack([r[:, :H, :W, 0, 0], r[:, :H, 1:, 0, 1]], axis=3)
    bot = jnp.stack([r[:, 1:, :W, 1, 0], r[:, 1:, 1:, 1, 1]], axis=3)
    full = jnp.stack([top, bot], axis=2)         # (N, H, 2, W, 2, cout)
    return full.reshape(N, 2 * H, 2 * W, cout)


# ----------------------------------------------------------------------------
# Weight layout converters (from PyTorch conventions)
# ----------------------------------------------------------------------------
def conv_w_to_mat(w_oihw):
    """Conv2d weight (out, in, kh, kw) -> (kh*kw*in, out)."""
    o = w_oihw.shape[0]
    return jnp.transpose(w_oihw, (2, 3, 1, 0)).reshape(-1, o)


def convT_w_to_subpixel_mat(w_iohw):
    """ConvTranspose2d weight (in, out, 4, 4) -> (4*in, 4*out).

    Rows ordered (a, b, cin) to match im2col(k=2, s=1); columns ordered
    (dy, dx, cout) for the 4 output phases.  B[a,b,ci,dy,dx,co] =
    w[ci, co, 3-dy-2a, 3-dx-2b].
    """
    cin, cout, kh, kw = w_iohw.shape
    assert kh == 4 and kw == 4
    blk = jnp.zeros((2, 2, cin, 2, 2, cout), w_iohw.dtype)
    for a in range(2):
        for b in range(2):
            for dy in range(2):
                for dx in range(2):
                    ky = 3 - dy - 2 * a
                    kx = 3 - dx - 2 * b
                    blk = blk.at[a, b, :, dy, dx, :].set(w_iohw[:, :, ky, kx])
    return blk.reshape(4 * cin, 4 * cout)


# ----------------------------------------------------------------------------
# Parameter init (deterministic, synthetic) with general eval-mode BN fold
# ----------------------------------------------------------------------------
def init_params(key, in_channels=3, features=8):
    f = features
    k = 4
    # (cin, cout, has_conv_bias) ; non-bias layers get BatchNorm params
    down_cfg = [(in_channels, f, True),          # first_down (LeakyReLU)
                (f, 2 * f, False), (2 * f, 4 * f, False), (4 * f, 8 * f, False),
                (8 * f, 8 * f, False), (8 * f, 8 * f, False), (8 * f, 8 * f, False),
                (8 * f, 8 * f, True)]            # bottom (ReLU)
    up_cfg = [(8 * f, 8 * f, False), (16 * f, 8 * f, False), (16 * f, 8 * f, False),
              (16 * f, 8 * f, False), (16 * f, 4 * f, False), (8 * f, 2 * f, False),
              (4 * f, f, False),
              (2 * f, in_channels, True)]        # last_up (Tanh)

    keys = iter(jax.random.split(key, 128))
    params = {"down": [], "up": []}

    def scale_bias(cout, has_conv_bias):
        if has_conv_bias:
            b = 0.1 * jax.random.normal(next(keys), (cout,), jnp.float32)
            return jnp.ones((cout,), jnp.float32), b
        gamma = 1.0 + 0.1 * jax.random.normal(next(keys), (cout,), jnp.float32)
        beta = 0.1 * jax.random.normal(next(keys), (cout,), jnp.float32)
        mean = 0.1 * jax.random.normal(next(keys), (cout,), jnp.float32)
        var = 1.0 + 0.1 * jax.random.uniform(next(keys), (cout,), jnp.float32)
        scale = gamma / jnp.sqrt(var + EPS)      # general eval-mode BN fold
        bias = beta - mean * scale
        return scale, bias

    for cin, cout, has_bias in down_cfg:
        w = jax.random.normal(next(keys), (cout, cin, k, k), jnp.float32)
        w = w / jnp.sqrt(float(k * k * cin))
        s, b = scale_bias(cout, has_bias)
        w = w * s[:, None, None, None]           # fold BN scale into weights
        params["down"].append({"w": conv_w_to_mat(w), "bias": b})

    for cin, cout, has_bias in up_cfg:
        w = jax.random.normal(next(keys), (cin, cout, k, k), jnp.float32)
        w = w / jnp.sqrt(float(k * k * cin))
        s, b = scale_bias(cout, has_bias)
        w = w * s[None, :, None, None]           # fold BN scale into weights
        params["up"].append({"w": convT_w_to_subpixel_mat(w), "bias": b})

    return params


# ----------------------------------------------------------------------------
# Generator forward (U-Net with skip connections)
# ----------------------------------------------------------------------------
def generator_forward(x_nchw, params):
    x = jnp.transpose(x_nchw, (0, 2, 3, 1)).astype(jnp.bfloat16)   # NCHW->NHWC

    down_acts = ["leaky"] * 7 + ["relu"]         # first_down, down1..6, bottom
    downs = []
    h = x
    for p, act in zip(params["down"], down_acts):
        h = conv_down(h, p["w"], p["bias"], act)
        downs.append(h)
    dn1, dn2, dn3, dn4, dn5, dn6, dn7, bottom = downs
    skips = [dn7, dn6, dn5, dn4, dn3, dn2, dn1]

    up_acts = ["relu"] * 7 + ["tanh"]            # up1..7, last_up
    u = bottom
    for i, p in enumerate(params["up"]):
        out_dtype = jnp.float32 if i == 7 else jnp.bfloat16
        u = conv_up(u, p["w"], p["bias"], up_acts[i], out_dtype)
        # TODO(synk): up1..up3 apply Dropout(0.5) in train mode; identity here.
        if i < 7:
            u = jnp.concatenate([u, skips[i]], axis=-1)   # torch.cat(..., dim=1)
    return jnp.transpose(u, (0, 3, 1, 2))        # NHWC -> NCHW


# ----------------------------------------------------------------------------
# Internal consistency checks against XLA convolutions (bf16-matched inputs)
# ----------------------------------------------------------------------------
def _rel_err(a, b):
    a = a.astype(jnp.float32)
    b = b.astype(jnp.float32)
    return float(jnp.max(jnp.abs(a - b)) / (jnp.max(jnp.abs(b)) + 1e-6))


def _sanity_checks():
    kx, kw1, kw2 = jax.random.split(jax.random.PRNGKey(7), 3)
    x = jax.random.normal(kx, (1, 10, 10, 3), jnp.float32)   # NHWC
    x_bf = x.astype(jnp.bfloat16)
    x_rt = x_bf.astype(jnp.float32)                          # bf16-rounded ref input
    zeros5 = jnp.zeros((5,), jnp.float32)

    # downsampling conv (reflect pad, stride 2)
    w = 0.2 * jax.random.normal(kw1, (5, 3, 4, 4), jnp.float32)      # OIHW
    w_rt = w.astype(jnp.bfloat16).astype(jnp.float32)
    mine = conv_down(x_bf, conv_w_to_mat(w), zeros5, "none", out_dtype=jnp.float32)
    xp = jnp.pad(x_rt, ((0, 0), (1, 1), (1, 1), (0, 0)), mode="reflect")
    ref = jax.lax.conv_general_dilated(
        xp, jnp.transpose(w_rt, (2, 3, 1, 0)), window_strides=(2, 2),
        padding="VALID", dimension_numbers=("NHWC", "HWIO", "NHWC"),
        preferred_element_type=jnp.float32)
    err = _rel_err(mine, ref)
    assert err < 1e-3, f"conv_down mismatch: {err}"

    # transposed conv (stride 2, pad 1) via sub-pixel decomposition
    wt = 0.2 * jax.random.normal(kw2, (3, 5, 4, 4), jnp.float32)     # IOHW
    wt_rt = wt.astype(jnp.bfloat16).astype(jnp.float32)
    mine = conv_up(x_bf, convT_w_to_subpixel_mat(wt), zeros5, "none",
                   out_dtype=jnp.float32)
    w_eq = jnp.transpose(wt_rt[:, :, ::-1, ::-1], (2, 3, 0, 1))      # HWIO
    ref = jax.lax.conv_general_dilated(
        x_rt, w_eq, window_strides=(1, 1), padding=[(2, 2), (2, 2)],
        lhs_dilation=(2, 2), dimension_numbers=("NHWC", "HWIO", "NHWC"),
        preferred_element_type=jnp.float32)
    err = _rel_err(mine, ref)
    assert err < 1e-3, f"conv_up mismatch: {err}"


# ----------------------------------------------------------------------------
if __name__ == "__main__":
    _sanity_checks()

    key = jax.random.PRNGKey(0)
    kx, kp = jax.random.split(key)

    # The architecture (8 stride-2 downsamples + reflect pad at the bottom)
    # requires spatial >= 256; keep batch/features small.
    B, C, S, F = 1, 3, 256, 8
    x = jax.random.normal(kx, (B, C, S, S), jnp.float32)
    params = init_params(kp, in_channels=C, features=F)

    fwd = jax.jit(generator_forward)
    y = fwd(x, params)
    y = jax.block_until_ready(y)

    assert y.shape == (B, C, S, S), y.shape
    assert bool(jnp.all(jnp.isfinite(y)))
    assert bool(jnp.all(jnp.abs(y) <= 1.0 + 1e-5))   # tanh output range
    print("KERNEL_OK")
</pallas_src>

<mosaic_0001>
module attributes {stable_mosaic.version = 11 : i64} {
  func.func @_fused_matmul_kernel(%arg0: i32, %arg1: memref<25x48xbf16, #tpu.memory_space<vmem>>, %arg2: memref<48x5xbf16, #tpu.memory_space<vmem>>, %arg3: memref<1x5xf32, #tpu.memory_space<vmem>>, %arg4: memref<25x5xf32, #tpu.memory_space<vmem>>) attributes {dimension_semantics = [#tpu.dimension_semantics<parallel>], iteration_bounds = array<i64: 1>, scalar_prefetch = 0 : i64, scratch_operands = 0 : i64, tpu.core_type = #tpu.core_type<tc>, window_params = [{transform_indices = @transform_0, window_bounds = array<i64: 25, 48>}, {pipeline_mode = #tpu.pipeline_mode<synchronous>, transform_indices = @transform_1, window_bounds = array<i64: 48, 5>}, {pipeline_mode = #tpu.pipeline_mode<synchronous>, transform_indices = @transform_2, window_bounds = array<i64: 1, 5>}, {transform_indices = @transform_3, window_bounds = array<i64: 25, 5>}]} {
    %c0 = arith.constant 0 : index
    %c0_0 = arith.constant 0 : index
    %0 = vector.load %arg1[%c0, %c0_0] : memref<25x48xbf16, #tpu.memory_space<vmem>>, vector<25x48xbf16>
    %c0_1 = arith.constant 0 : index
    %c0_2 = arith.constant 0 : index
    %1 = vector.load %arg2[%c0_1, %c0_2] : memref<48x5xbf16, #tpu.memory_space<vmem>>, vector<48x5xbf16>
    %cst = arith.constant dense<0.000000e+00> : vector<25x5xf32>
    %2 = tpu.matmul %0, %1, %cst {dimension_numbers = #tpu.dot_dimension_numbers<[1], [0], [0], [1], [0, 0, 1, 1], [], []>} : vector<25x48xbf16>, vector<48x5xbf16>, vector<25x5xf32> -> vector<25x5xf32>
    %c0_3 = arith.constant 0 : index
    %c0_4 = arith.constant 0 : index
    %3 = vector.load %arg3[%c0_3, %c0_4] : memref<1x5xf32, #tpu.memory_space<vmem>>, vector<1x5xf32>
    %4 = vector.broadcast %3 : vector<1x5xf32> to vector<25x5xf32>
    %5 = arith.addf %2, %4 : vector<25x5xf32>
    %c0_5 = arith.constant 0 : index
    %c0_6 = arith.constant 0 : index
    %6 = vector.load %arg4[%c0_5, %c0_6] : memref<25x5xf32, #tpu.memory_space<vmem>>, vector<25x5xf32>
    tpu.vector_store %arg4[%c0_5, %c0_6], %5 {strides = array<i32>} : memref<25x5xf32, #tpu.memory_space<vmem>>, vector<25x5xf32>,
    return
  }
  func.func @transform_0(%arg0: i32) -> (i32, i32) {
    %c0_i32 = arith.constant 0 : i32
    %c0_i32_0 = arith.constant 0 : i32
    return %arg0, %c0_i32 : i32, i32
  }
  func.func @transform_1(%arg0: i32) -> (i32, i32) {
    %c0_i32 = arith.constant 0 : i32
    %c0_i32_0 = arith.constant 0 : i32
    %c0_i32_1 = arith.constant 0 : i32
    return %c0_i32, %c0_i32_0 : i32, i32
  }
  func.func @transform_2(%arg0: i32) -> (i32, i32) {
    %c0_i32 = arith.constant 0 : i32
    %c0_i32_0 = arith.constant 0 : i32
    %c0_i32_1 = arith.constant 0 : i32
    return %c0_i32, %c0_i32_0 : i32, i32
  }
  func.func @transform_3(%arg0: i32) -> (i32, i32) {
    %c0_i32 = arith.constant 0 : i32
    %c0_i32_0 = arith.constant 0 : i32
    return %arg0, %c0_i32 : i32, i32
  }
}

</mosaic_0001>

<llo_original>
// kernel: tpu_custom_call.1
$region0: #{tpu_custom_call.1}
  #allocation0 [shape = 'u32[]', space=smem, size = 0x4, offset = 0x4, fixed_abs, tag = 'smem constant byte address 0x4 - core index']
  #allocation1 [shape = 'u32[144,128]{1,0:T(1,128)}', space=vmem, size = 0x12000, scoped, tag = 'internal scratch']
  %s0 = inlined_call_operand.vmem [shape: bf16[25,48], index: 0, kind: input, shape index: {}]
  %s1 = inlined_call_operand.vmem [shape: bf16[48,5], index: 1, kind: input, shape index: {}]
  %s2 = inlined_call_operand.vmem [shape: f32[1,5], index: 2, kind: input, shape index: {}]
  %s3 = inlined_call_operand.vmem [shape: f32[25,5], index: 3, kind: output, shape index: {}]
  %s4 = sld [smem:[#allocation0]]
  $region22: #{tpu_custom_call.1} parent=0
    _
  %s6 = ssub.s32 1, %s4
  %s7 = scalar_select 0, %s6, %s4
  // Predicated region
  $region2: #{tpu_custom_call.1} parent=0 // pred_check
    _
  $region3: #{tpu_custom_call.1} parent=0 // pred_check_branch
    %9 = sbr.rel (0) target = $region5
  $region4: #{tpu_custom_call.1} parent=0 // pred_region
    _
  $region5: #{tpu_custom_call.1} parent=0 // pred_fallthru
    _
  // Predicated region
  $region6: #{tpu_custom_call.1} parent=0 // pred_check
    _
  $region7: #{tpu_custom_call.1} parent=0 // pred_check_branch
    %11 = sbr.rel (0) target = $region9
  $region8: #{tpu_custom_call.1} parent=0 // pred_region
    _
  $region9: #{tpu_custom_call.1} parent=0 // pred_fallthru
    _
  // Predicated region
  $region10: #{tpu_custom_call.1} parent=0 // pred_check
    _
  $region11: #{tpu_custom_call.1} parent=0 // pred_check_branch
    %13 = sbr.rel (0) target = $region13
  $region12: #{tpu_custom_call.1} parent=0 // pred_region
    _
  $region13: #{tpu_custom_call.1} parent=0 // pred_fallthru
    _
  %v15 = vld [vmem:[%s0] sm:$0xf]
  %v16 = vld [vmem:[%s0 + $0x4] sm:$0xf]
  %v17 = vld [vmem:[%s0 + $0x8] sm:$0xf]
  %v18 = vld [vmem:[%s0 + $0xc] sm:$0x1]
  %v19 = vld [vmem:[%s1] sm:$0xf]
  %v20 = vld [vmem:[%s1 + $0x4] sm:$0xf]
  %v21 = vld [vmem:[%s1 + $0x8] sm:$0xf]
  %v22 = vld [vmem:[%s1 + $0xc] sm:$0xf]
  %v23 = vld [vmem:[%s1 + $0x10] sm:$0xf]
  %v24 = vld [vmem:[%s1 + $0x14] sm:$0xf]
  %v25 = vld [vmem:[%s2] sm:$0x1]
  %v27 = vlaneseq
  %v28 = vshrl.u32 %v27, 7
  %v29 = vsub.s32 0, %v28
  %v30 = vrot.slane %v25, %v29
  %v36 = vunpack.c.l.b16 %v15
  %v37 = vunpack.c.l.b16 %v16
  %v38 = vunpack.c.l.b16 %v17
  %v39 = vunpack.c.l.b16 %v18
  %v40 = vpack.c.b16 %v37, %v36
  %v41 = vpack.c.b16 %v39, %v38
  %v48 = vunpack.c.l.b16 %v19
  %v49 = vunpack.c.l.b16 %v20
  %v50 = vunpack.c.l.b16 %v21
  %v51 = vunpack.c.l.b16 %v22
  %v52 = vunpack.c.l.b16 %v23
  %v53 = vunpack.c.l.b16 %v24
  %v54 = vpack.c.b16 %v49, %v48
  %v55 = vpack.c.b16 %v51, %v50
  %v56 = vpack.c.b16 %v53, %v52
  %vm60 = vcmask 392192
  %v62 = vsel %vm60, %v40, 0
  %v65 = vsel %vm60, %v41, 0
  %67 = vmatprep.subr.bf16.mxu0 0
  %68 = vmatpush1.bf16.msra.mxu0 %v54
  %69 = vmatprep.subr.bf16.mxu0 0
  %70 = vmatpush1.bf16.msra.mxu0 %v55
  %71 = vmatprep.subr.bf16.mxu0 0
  %72 = vmatpush1.bf16.msra.mxu0 %v56
  %73 = vmatprep.subr.bf16.mxu0 0
  %74 = vmatpush1.bf16.msra.mxu0 0
  %75 = vmatprep.subr.bf16.mxu0 0
  %76 = vmatpush1.bf16.msra.mxu0 0
  %77 = vmatprep.subr.bf16.mxu0 0
  %78 = vmatpush1.bf16.msra.mxu0 0
  %79 = vmatprep.subr.bf16.mxu0 0
  %80 = vmatpush1.bf16.msra.mxu0 0
  %81 = vmatprep.subr.bf16.mxu0 0
  %82 = vmatpush1.bf16.msra.mxu0 0
  %83 = vmatprep.subr.bf16.mxu0 0
  %84 = vmatpush1.bf16.msra.mxu0 0
  %85 = vmatprep.subr.bf16.mxu0 0
  %86 = vmatpush1.bf16.msra.mxu0 0
  %87 = vmatprep.subr.bf16.mxu0 0
  %88 = vmatpush1.bf16.msra.mxu0 0
  %89 = vmatprep.subr.bf16.mxu0 0
  %90 = vmatpush1.bf16.msra.mxu0 0
  %91 = vmatprep.subr.bf16.mxu0 0
  %92 = vmatpush1.bf16.msra.mxu0 0
  %93 = vmatprep.subr.bf16.mxu0 0
  %94 = vmatpush1.bf16.msra.mxu0 0
  %95 = vmatprep.subr.bf16.mxu0 0
  %96 = vmatpush1.bf16.msra.mxu0 0
  %97 = vmatprep.subr.bf16.mxu0 0
  %98 = vmatpush1.bf16.msra.mxu0 0
  %99 = vmatprep.mubr.bf16.mxu0 0
  %100 = vmatmul.mubr.bf16.gmra.mrb[0].mxu0 %v62
  %v101 = vpop.f32.mrb[0].mxu0
  %v102 = vadd.f32 %v30, %v101
  %v103 = vpop.f32.mrb[0].mxu0
  %v104 = vpop.f32.mrb[0].mxu0
  %v105 = vadd.f32 %v30, %v104
  %v106 = vpop.f32.mrb[0].mxu0
  %107 = vmatprep.mubr.bf16.mxu0 0
  %108 = vmatmul.mubr.bf16.gmra.mrb[0].mxu0 %v65
  %v109 = vpop.f32.mrb[0].mxu0
  %v110 = vadd.f32 %v30, %v109
  %v111 = vpop.f32.mrb[0].mxu0
  %v112 = vpop.f32.mrb[0].mxu0
  %v113 = vadd.f32 %v30, %v112
  %v114 = vpop.f32.mrb[0].mxu0
  %115 = vdwg.mxu0
  %vm116 = vcmask 39936
  %117 = vst.msk [vmem:[%s3] sm:$0xff] %vm116, %v102
  %118 = vst.msk [vmem:[%s3 + $0x8] sm:$0xff] %vm116, %v105
  %119 = vst.msk [vmem:[%s3 + $0x10] sm:$0xff] %vm116, %v110
  %vm120 = vcmask 32768
  %121 = vst.msk [vmem:[%s3 + $0x18] sm:$0x1] %vm120, %v113
  // Predicated region
  $region14: #{tpu_custom_call.1} parent=0 // pred_check
    _
  $region15: #{tpu_custom_call.1} parent=0 // pred_check_branch
    %123 = sbr.rel (0) target = $region17
  $region16: #{tpu_custom_call.1} parent=0 // pred_region
    _
  $region17: #{tpu_custom_call.1} parent=0 // pred_fallthru
    _
  // Predicated region
  $region18: #{tpu_custom_call.1} parent=0 // pred_check
    _
  $region19: #{tpu_custom_call.1} parent=0 // pred_check_branch
    %125 = sbr.rel (0) target = $region21
  $region20: #{tpu_custom_call.1} parent=0 // pred_region
    _
  $region21: #{tpu_custom_call.1} parent=0 // pred_fallthru
    _

</llo_original>
